<compile_context>
chip_gen: v5e
topology: v5e:2x2
jax: 0.10.0
libtpu: 0.0.40
codegen_flags: <defaults>
</compile_context>

<pallas_src>
import jax
import jax.numpy as jnp
import numpy as np
from jax.experimental import pallas as pl
from jax.experimental.pallas import tpu as pltpu

# ---- module constants (mirrors get_bond_feature_dims()) ----
FULL_BOND_FEATURE_DIMS = [5, 6, 2]
NUM_FEATS = len(FULL_BOND_FEATURE_DIMS)
TABLE_SIZES = [d + 2 for d in FULL_BOND_FEATURE_DIMS]          # [7, 8, 4]
TABLE_OFFSETS = np.cumsum([0] + TABLE_SIZES[:-1]).tolist()     # [0, 7, 15]
K_TOTAL = sum(TABLE_SIZES)                                     # 19
K_PAD = ((K_TOTAL + 7) // 8) * 8                               # 24 (8-sublane aligned)

_LANE = 128
_SUBLANE = 8


def _round_up(x, m):
    return (x + m - 1) // m * m


def _bond_encoder_kernel(idx_ref, p_ref, t_ref, w_ref, out_ref):
    """One grid step == TEP packed rows == TEP*r edges.

    idx_ref: (TEP, r*NF)       int32 raw bond features, r edges packed per row.
    p_ref:   (r*NF, r*K_PAD)   f32 constant 0/1 lane-expansion matrix.
    t_ref:   (1, r*K_PAD)      f32 constant compare targets (-1 on pad columns).
    w_ref:   (r*K_PAD, r*D)    f32 block-diagonal concatenated embedding table.
    out_ref: (TEP, r*D)        r summed bond embeddings packed per row.
    """
    # Spread the r*NF index lanes over the r*K_PAD table columns on the MXU.
    # Exact: 0/1 weights times small integers.
    expanded = jnp.dot(idx_ref[...].astype(jnp.float32), p_ref[...],
                       preferred_element_type=jnp.float32,
                       precision=jax.lax.Precision.HIGHEST)
    # Single compare + convert builds the whole multi-hot.  Pad columns have
    # expanded == 0 and target == -1, so they never match.
    mh = (expanded == t_ref[...]).astype(jnp.float32)
    # Embedding gather+sum == multi_hot @ block_diag(tables); output is already
    # in the packed lane-dense layout -> straight full-lane store.
    out_ref[...] = jnp.dot(mh, w_ref[...],
                           preferred_element_type=jnp.float32,
                           precision=jax.lax.Precision.HIGHEST
                           ).astype(out_ref.dtype)


def _build_expand_and_target(r, k_pad):
    """Constant lane-expansion matrix P and compare-target row T.

    P[j*NF + f, j*k_pad + q] = 1        for q in feature f's table-row range
    T[0, j*k_pad + q]        = q - off_f  (local row an index must equal)
    T = -1 on columns belonging to no feature (table row padding)."""
    p = np.zeros((r * NUM_FEATS, r * k_pad), np.float32)
    t = np.full((1, r * k_pad), -1.0, np.float32)
    for j in range(r):
        for f in range(NUM_FEATS):
            off, size = TABLE_OFFSETS[f], TABLE_SIZES[f]
            for q in range(off, off + size):
                p[j * NUM_FEATS + f, j * k_pad + q] = 1.0
                t[0, j * k_pad + q] = float(q - off)
    return jnp.asarray(p), jnp.asarray(t)


def _padded_vmem_bytes(shape, itemsize=4):
    rows, cols = shape
    return _round_up(max(rows, 1), _SUBLANE) * _round_up(cols, _LANE) * itemsize


def bond_encoder_forward(edge_attr, weight, *, tile_e=8192,
                         out_dtype=jnp.float32, interpret=False):
    """edge_attr: (E, 3) int raw bond-feature indices.
       weight:    (K_PAD, D) f32 concatenated (zero-row-padded) embedding table.
       returns    (E, D) `out_dtype` summed bond embeddings.
    """
    E, nf = edge_attr.shape
    assert nf == NUM_FEATS
    k_rows, D = weight.shape
    assert k_rows == K_PAD

    # Lane-dense output layout: either pack r edges per row (r*D == 128), or
    # zero-pad the embedding columns to the next multiple of 128.
    if D % _LANE == 0:
        r, d_pad = 1, D
    elif D < _LANE and _LANE % D == 0:
        r, d_pad = _LANE // D, D
    else:
        r, d_pad = 1, _round_up(D, _LANE)

    # --- tile selection ------------------------------------------------------
    grain = _SUBLANE * r                          # keeps (8,128) alignment after packing
    e_grain = max(grain, _round_up(E, grain))     # tiny graphs: don't pad to a full tile
    tile = min(_round_up(tile_e, grain), e_grain)
    num_steps = pl.cdiv(e_grain, tile)
    if num_steps == 1 and e_grain >= 2 * grain:
        num_steps = 2                             # give v7x's 2nd TensorCore work
    tile = _round_up(pl.cdiv(e_grain, num_steps), grain)  # re-balance -> minimal padding
    e_pad = num_steps * tile
    tep = tile // r                               # packed rows per grid step

    # --- operands --------------------------------------------------------------
    x = edge_attr.astype(jnp.int32)
    if e_pad != E:
        x = jnp.pad(x, ((0, e_pad - E), (0, 0)))           # padded rows trimmed below
    idx_packed = x.reshape(e_pad // r, r * nf)             # free row-major view

    w = weight.astype(jnp.float32)
    if d_pad != D:
        w = jnp.pad(w, ((0, 0), (0, d_pad - D)))
    # Block-diagonal copy of the table; constant index_map -> VMEM-resident.
    wbd = jnp.kron(jnp.eye(r, dtype=w.dtype), w)           # (r*K_PAD, r*d_pad)
    p_mat, t_row = _build_expand_and_target(r, k_rows)

    # --- VMEM budget: double-buffered per-step blocks + resident constants ----
    vmem_need = (
        2 * _padded_vmem_bytes((tep, r * nf))               # idx block
        + 2 * _padded_vmem_bytes((tep, r * d_pad))          # out block
        + 2 * _padded_vmem_bytes((tep, r * k_rows))         # expanded / mh temps
        + 2 * _padded_vmem_bytes((r * nf, r * k_rows))      # P
        + 2 * _padded_vmem_bytes((1, r * k_rows))           # T
        + 2 * _padded_vmem_bytes((r * k_rows, r * d_pad))   # block-diag table
    )
    vmem_limit = int(min(64 << 20, max(2 * vmem_need + (4 << 20), 16 << 20)))

    out_packed = pl.pallas_call(
        _bond_encoder_kernel,
        out_shape=jax.ShapeDtypeStruct((e_pad // r, r * d_pad), out_dtype),
        grid=(num_steps,),
        in_specs=[
            pl.BlockSpec((tep, r * nf), lambda i: (i, 0)),
            pl.BlockSpec((r * nf, r * k_rows), lambda i: (0, 0)),
            pl.BlockSpec((1, r * k_rows), lambda i: (0, 0)),
            pl.BlockSpec((r * k_rows, r * d_pad), lambda i: (0, 0)),
        ],
        out_specs=pl.BlockSpec((tep, r * d_pad), lambda i: (i, 0)),
        compiler_params=pltpu.CompilerParams(
            dimension_semantics=("parallel",),
            vmem_limit_bytes=vmem_limit),
        interpret=interpret,
    )(idx_packed, p_mat, t_row, wbd)

    out = out_packed.reshape(e_pad, d_pad)                  # free row-major view
    if e_pad == E and d_pad == D:
        return out                                          # no trailing copy at all
    # NOTE: under jit this slice fuses into the consumer; for fully fused
    # pipelines keep E tile-aligned upstream and consume `out` directly.
    return out[:E, :D]


def init_bond_encoder_weights(key, emb_dim):
    """xavier_uniform per table (as in the PyTorch module), concatenated along
    rows and zero-padded from K_TOTAL=19 to K_PAD=24 rows (padding rows are
    never indexed, so the forward result is unchanged)."""
    tables = []
    for n_rows in TABLE_SIZES:
        key, sub = jax.random.split(key)
        bound = float(np.sqrt(6.0 / (n_rows + emb_dim)))
        tables.append(jax.random.uniform(
            sub, (n_rows, emb_dim), jnp.float32, minval=-bound, maxval=bound))
    tables.append(jnp.zeros((K_PAD - K_TOTAL, emb_dim), jnp.float32))
    return jnp.concatenate(tables, axis=0)                  # (K_PAD, emb_dim)


def bond_encoder_reference(edge_attr, weight):
    """Plain-JAX reference of the PyTorch forward (gather + sum)."""
    offsets = jnp.asarray(TABLE_OFFSETS, dtype=jnp.int32)
    idx = edge_attr.astype(jnp.int32) + offsets[None, :]
    return jnp.sum(weight[idx], axis=1)                     # (E, D)


if __name__ == "__main__":
    key = jax.random.PRNGKey(0)
    emb_dim = 32
    num_edges = 200          # deliberately not a tile multiple: exercises padding

    w_key, idx_key = jax.random.split(key)
    weight = init_bond_encoder_weights(w_key, emb_dim)

    # edge_attr: (E, 3) ints, feature i in [0, dim_i + 2)
    idx_keys = jax.random.split(idx_key, NUM_FEATS)
    cols = [jax.random.randint(idx_keys[i], (num_edges, 1), 0, TABLE_SIZES[i],
                               dtype=jnp.int32)
            for i in range(NUM_FEATS)]
    edge_attr = jnp.concatenate(cols, axis=1)

    out = bond_encoder_forward(edge_attr, weight)
    out = jax.block_until_ready(out)

    ref = bond_encoder_reference(edge_attr, weight)
    assert out.shape == (num_edges, emb_dim)
    assert out.dtype == jnp.float32
    np.testing.assert_allclose(np.asarray(out), np.asarray(ref),
                               rtol=1e-5, atol=1e-5)
    print("KERNEL_OK")
</pallas_src>

<mosaic_0001>
module attributes {stable_mosaic.version = 11 : i64} {
  func.func @_bond_encoder_kernel(%arg0: i32, %arg1: memref<32x12xi32, #tpu.memory_space<vmem>>, %arg2: memref<12x96xf32, #tpu.memory_space<vmem>>, %arg3: memref<1x96xf32, #tpu.memory_space<vmem>>, %arg4: memref<96x128xf32, #tpu.memory_space<vmem>>, %arg5: memref<32x128xf32, #tpu.memory_space<vmem>>) attributes {dimension_semantics = [#tpu.dimension_semantics<parallel>], iteration_bounds = array<i64: 2>, scalar_prefetch = 0 : i64, scratch_operands = 0 : i64, tpu.core_type = #tpu.core_type<tc>, window_params = [{transform_indices = @transform_0, window_bounds = array<i64: 32, 12>}, {pipeline_mode = #tpu.pipeline_mode<synchronous>, transform_indices = @transform_1, window_bounds = array<i64: 12, 96>}, {pipeline_mode = #tpu.pipeline_mode<synchronous>, transform_indices = @transform_2, window_bounds = array<i64: 1, 96>}, {pipeline_mode = #tpu.pipeline_mode<synchronous>, transform_indices = @transform_3, window_bounds = array<i64: 96, 128>}, {transform_indices = @transform_4, window_bounds = array<i64: 32, 128>}]} {
    %c0 = arith.constant 0 : index
    %c0_0 = arith.constant 0 : index
    %0 = vector.load %arg1[%c0, %c0_0] : memref<32x12xi32, #tpu.memory_space<vmem>>, vector<32x12xi32>
    %1 = arith.sitofp %0 : vector<32x12xi32> to vector<32x12xf32>
    %c0_1 = arith.constant 0 : index
    %c0_2 = arith.constant 0 : index
    %2 = vector.load %arg2[%c0_1, %c0_2] : memref<12x96xf32, #tpu.memory_space<vmem>>, vector<12x96xf32>
    %cst = arith.constant dense<0.000000e+00> : vector<32x96xf32>
    %3 = tpu.matmul %1, %2, %cst {dimension_numbers = #tpu.dot_dimension_numbers<[1], [0], [0], [1], [0, 0, 1, 1], [], []>, precision = #tpu.contract_precision<fp32>} : vector<32x12xf32>, vector<12x96xf32>, vector<32x96xf32> -> vector<32x96xf32>
    %c0_3 = arith.constant 0 : index
    %c0_4 = arith.constant 0 : index
    %4 = vector.load %arg3[%c0_3, %c0_4] : memref<1x96xf32, #tpu.memory_space<vmem>>, vector<1x96xf32>
    %5 = vector.broadcast %4 : vector<1x96xf32> to vector<32x96xf32>
    %6 = arith.cmpf oeq, %3, %5 : vector<32x96xf32>
    %7 = arith.extui %6 : vector<32x96xi1> to vector<32x96xi32>
    %8 = arith.sitofp %7 : vector<32x96xi32> to vector<32x96xf32>
    %c0_5 = arith.constant 0 : index
    %c0_6 = arith.constant 0 : index
    %9 = vector.load %arg4[%c0_5, %c0_6] : memref<96x128xf32, #tpu.memory_space<vmem>>, vector<96x128xf32>
    %cst_7 = arith.constant dense<0.000000e+00> : vector<32x128xf32>
    %10 = tpu.matmul %8, %9, %cst_7 {dimension_numbers = #tpu.dot_dimension_numbers<[1], [0], [0], [1], [0, 0, 1, 1], [], []>, precision = #tpu.contract_precision<fp32>} : vector<32x96xf32>, vector<96x128xf32>, vector<32x128xf32> -> vector<32x128xf32>
    %c0_8 = arith.constant 0 : index
    %c0_9 = arith.constant 0 : index
    %11 = vector.load %arg5[%c0_8, %c0_9] : memref<32x128xf32, #tpu.memory_space<vmem>>, vector<32x128xf32>
    tpu.vector_store %arg5[%c0_8, %c0_9], %10 {strides = array<i32>} : memref<32x128xf32, #tpu.memory_space<vmem>>, vector<32x128xf32>,
    return
  }
  func.func @transform_0(%arg0: i32) -> (i32, i32) {
    %c0_i32 = arith.constant 0 : i32
    %c0_i32_0 = arith.constant 0 : i32
    return %arg0, %c0_i32 : i32, i32
  }
  func.func @transform_1(%arg0: i32) -> (i32, i32) {
    %c0_i32 = arith.constant 0 : i32
    %c0_i32_0 = arith.constant 0 : i32
    %c0_i32_1 = arith.constant 0 : i32
    return %c0_i32, %c0_i32_0 : i32, i32
  }
  func.func @transform_2(%arg0: i32) -> (i32, i32) {
    %c0_i32 = arith.constant 0 : i32
    %c0_i32_0 = arith.constant 0 : i32
    %c0_i32_1 = arith.constant 0 : i32
    return %c0_i32, %c0_i32_0 : i32, i32
  }
  func.func @transform_3(%arg0: i32) -> (i32, i32) {
    %c0_i32 = arith.constant 0 : i32
    %c0_i32_0 = arith.constant 0 : i32
    %c0_i32_1 = arith.constant 0 : i32
    return %c0_i32, %c0_i32_0 : i32, i32
  }
  func.func @transform_4(%arg0: i32) -> (i32, i32) {
    %c0_i32 = arith.constant 0 : i32
    %c0_i32_0 = arith.constant 0 : i32
    return %arg0, %c0_i32 : i32, i32
  }
}

</mosaic_0001>

<llo_original>
// kernel: tpu_custom_call.1
$region0: #{tpu_custom_call.1}
  #allocation0 [shape = 'u32[]', space=smem, size = 0x4, offset = 0x4, fixed_abs, tag = 'smem constant byte address 0x4 - core index']
  #allocation1 [shape = 'u32[72,128]{1,0:T(1,128)}', space=vmem, size = 0x9000, scoped, tag = 'internal scratch']
  %s0 = inlined_call_operand.vmem [shape: s32[64,12], index: 0, kind: input, shape index: {}]
  %s1 = inlined_call_operand.vmem [shape: f32[12,96], index: 1, kind: input, shape index: {}]
  %s2 = inlined_call_operand.vmem [shape: f32[1,96], index: 2, kind: input, shape index: {}]
  %s3 = inlined_call_operand.hbm [shape: f32[96,128], index: 3, kind: input, shape index: {}]
  %s4 = inlined_call_operand.hbm [shape: f32[64,128], index: 4, kind: output, shape index: {}]
  %s5 = sld [smem:[#allocation0]]
  $region53: #{tpu_custom_call.1} parent=0
    _
  %s7 = ssub.s32 1, %s5
  %s8 = scalar_select 0, %s7, %s5
  $region1: #{tpu_custom_call.1} parent=0
    #allocation2 [shape = 'u8[49152]{0}', space=vmem, size = 0xc000, scoped, tag = 'input window, operand 3, single buffered']
    #allocation3 [shape = 's32[2]{0}', space=sflag, size = 0x8, scoped, tag = 'scoped memory for tpu_custom_call.1']
    #allocation4 [shape = 's32[2]{0}', space=sflag, size = 0x8, scoped, tag = 'scoped memory for tpu_custom_call.1']
    #allocation5 [shape = 'u8[32768]{0}', space=vmem, size = 0x8000, scoped, tag = 'output window, operand 0']
    %9 = vsyncpa [#allocation3], 0
    %10 = vsyncpa [#allocation4], 0
    %s11 = scalar_lea.sflag [#allocation4], 1
    %12 = vsyncpa %s11, 0
    loop: start=0, step=1, limit=4
    $region2: #{tpu_custom_call.1} parent=1 // loop_pre_header
      _
    $region3: #{tpu_custom_call.1} parent=1 // loop_header
      %s14 = sphi 0, %s18
      %p15 = scmp.ge.s32.totalorder %s14, 4
      %s24 = sphi 0, %s26
      %s27 = sphi 0, %s24
      %s28 = sphi 0, %s27
      %s44 = sphi 0, %s28
      %s48 = sphi 0, %s48
      %s50 = sphi 0, %s48
      %s51 = sphi 0, %s50
      %s65 = sphi 0, %s51
      %s69 = sphi 0, %s69
      %s71 = sphi 0, %s69
      %s72 = sphi 0, %s71
      %s86 = sphi 0, %s72
      %s90 = sphi 0, %s90
      %s92 = sphi 0, %s90
      %s93 = sphi 0, %s92
      %s107 = sphi 0, %s93
      %s113 = sphi 0, %s115
      %s116 = sphi 0, %s113
      %s117 = sphi 0, %s116
      %s133 = sphi 0, %s117
    $region4: #{tpu_custom_call.1} parent=1 // loop_header_branch
      %17 = sbr.rel (%p15) target = $region8
    $region5: #{tpu_custom_call.1} parent=1 // loop_body
      %s19 = ssub.s32 %s14, 1
      %s20 = ssub.s32 %s14, 2
      %s21 = sadd.s32 %s14, 1
      %s22 = ssub.s32 %s14, %s21
      %p23 = scmp.eq.s32.totalorder %s22, 0
      %s25 = sadd.s32 %s24, 1
      %s26 = scalar_select %p23, %s24, %s25
      %p29 = pneg %p23
      %p30 = scmp.eq.s32.totalorder %s14, 1
      %p31 = por %p29, %p30
      %p32 = scmp.ne.s32.totalorder %s24, %s27
      %p33 = scmp.eq.s32.totalorder %s14, 0
      %p34 = por %p32, %p33
      %p35 = scmp.ne.s32.totalorder %s24, %s27
      %p36 = scmp.eq.s32.totalorder %s19, 1
      %p37 = por %p35, %p36
      %p38 = scmp.ne.s32.totalorder %s27, %s28
      %p39 = scmp.eq.s32.totalorder %s19, 0
      %p40 = por %p38, %p39
      %p41 = scmp.ne.s32.totalorder %s27, %s28
      %p42 = scmp.eq.s32.totalorder %s20, 1
      %p43 = por %p41, %p42
      %p45 = scmp.ne.s32.totalorder %s28, %s44
      %p46 = scmp.eq.s32.totalorder %s20, 0
      %p47 = por %p45, %p46
      %s49 = sadd.s32 %s48, 1
      %p52 = scmp.eq.s32.totalorder %s14, 1
      %p53 = scmp.ne.s32.totalorder %s48, %s50
      %p54 = scmp.eq.s32.totalorder %s14, 0
      %p55 = por %p53, %p54
      %p56 = scmp.ne.s32.totalorder %s48, %s50
      %p57 = scmp.eq.s32.totalorder %s19, 1
      %p58 = por %p56, %p57
      %p59 = scmp.ne.s32.totalorder %s50, %s51
      %p60 = scmp.eq.s32.totalorder %s19, 0
      %p61 = por %p59, %p60
      %p62 = scmp.ne.s32.totalorder %s50, %s51
      %p63 = scmp.eq.s32.totalorder %s20, 1
      %p64 = por %p62, %p63
      %p66 = scmp.ne.s32.totalorder %s51, %s65
      %p67 = scmp.eq.s32.totalorder %s20, 0
      %p68 = por %p66, %p67
      %s70 = sadd.s32 %s69, 1
      %p73 = scmp.eq.s32.totalorder %s14, 1
      %p74 = scmp.ne.s32.totalorder %s69, %s71
      %p75 = scmp.eq.s32.totalorder %s14, 0
      %p76 = por %p74, %p75
      %p77 = scmp.ne.s32.totalorder %s69, %s71
      %p78 = scmp.eq.s32.totalorder %s19, 1
      %p79 = por %p77, %p78
      %p80 = scmp.ne.s32.totalorder %s71, %s72
      %p81 = scmp.eq.s32.totalorder %s19, 0
      %p82 = por %p80, %p81
      %p83 = scmp.ne.s32.totalorder %s71, %s72
      %p84 = scmp.eq.s32.totalorder %s20, 1
      %p85 = por %p83, %p84
      %p87 = scmp.ne.s32.totalorder %s72, %s86
      %p88 = scmp.eq.s32.totalorder %s20, 0
      %p89 = por %p87, %p88
      %s91 = sadd.s32 %s90, 1
      %p94 = scmp.eq.s32.totalorder %s14, 1
      %p95 = scmp.ne.s32.totalorder %s90, %s92
      %p96 = scmp.eq.s32.totalorder %s14, 0
      %p97 = por %p95, %p96
      %p98 = scmp.ne.s32.totalorder %s90, %s92
      %p99 = scmp.eq.s32.totalorder %s19, 1
      %p100 = por %p98, %p99
      %p101 = scmp.ne.s32.totalorder %s92, %s93
      %p102 = scmp.eq.s32.totalorder %s19, 0
      %p103 = por %p101, %p102
      %p104 = scmp.ne.s32.totalorder %s92, %s93
      %p105 = scmp.eq.s32.totalorder %s20, 1
      %p106 = por %p104, %p105
      %p108 = scmp.ne.s32.totalorder %s93, %s107
      %p109 = scmp.eq.s32.totalorder %s20, 0
      %p110 = por %p108, %p109
      %s111 = ssub.s32 %s14, %s21
      %p112 = scmp.eq.s32.totalorder %s111, 0
      %s114 = sadd.s32 %s113, 1
      %s115 = scalar_select %p112, %s113, %s114
      %p118 = pneg %p112
      %p119 = scmp.eq.s32.totalorder %s14, 1
      %p120 = por %p118, %p119
      %p121 = scmp.ne.s32.totalorder %s113, %s116
      %p122 = scmp.eq.s32.totalorder %s14, 0
      %p123 = por %p121, %p122
      %p124 = scmp.ne.s32.totalorder %s113, %s116
      %p125 = scmp.eq.s32.totalorder %s19, 1
      %p126 = por %p124, %p125
      %p127 = scmp.ne.s32.totalorder %s116, %s117
      %p128 = scmp.eq.s32.totalorder %s19, 0
      %p129 = por %p127, %p128
      %p130 = scmp.ne.s32.totalorder %s116, %s117
      %p131 = scmp.eq.s32.totalorder %s20, 1
      %p132 = por %p130, %p131
      %p134 = scmp.ne.s32.totalorder %s117, %s133
      %p135 = scmp.eq.s32.totalorder %s20, 0
      %p136 = por %p134, %p135
      %p137 = scmp.le.s32.totalorder 1, %s14
      %p138 = scmp.lt.s32.totalorder %s14, 3
      %p139 = pnand %p137, %p138
      %p140 = pneg %p139
      // Predicated region
      $region9: #{tpu_custom_call.1} parent=5 // pred_check
        _
      $region10: #{tpu_custom_call.1} parent=5 // pred_check_branch
        %142 = sbr.rel (%p139) target = $region12
      $region11: #{tpu_custom_call.1} parent=5 // pred_region
        %s143 = ssub.s32 %s14, 1
        // Predicated region
        $region13: #{tpu_custom_call.1} parent=11 // pred_check
          %p144 = pneg %p61
        $region14: #{tpu_custom_call.1} parent=11 // pred_check_branch
          %146 = sbr.rel (%p144) target = $region16
        $region15: #{tpu_custom_call.1} parent=11 // pred_region
          _
        $region16: #{tpu_custom_call.1} parent=11 // pred_fallthru
          _
        // Predicated region
        $region17: #{tpu_custom_call.1} parent=11 // pred_check
          %p147 = pneg %p82
        $region18: #{tpu_custom_call.1} parent=11 // pred_check_branch
          %149 = sbr.rel (%p147) target = $region20
        $region19: #{tpu_custom_call.1} parent=11 // pred_region
          _
        $region20: #{tpu_custom_call.1} parent=11 // pred_fallthru
          _
        // Predicated region
        $region21: #{tpu_custom_call.1} parent=11 // pred_check
          %p150 = pneg %p103
        $region22: #{tpu_custom_call.1} parent=11 // pred_check_branch
          %152 = sbr.rel (%p150) target = $region24
        $region23: #{tpu_custom_call.1} parent=11 // pred_region
          %154 = vsyncadd [#allocation3], 0
          %s155 = sshll.u32 %s3, 4
          %s156 = int_to_ptr.hbm [resolvable:$true] %s155
          %s157 = sshll.u32 [#allocation2], 4
          %s158 = int_to_ptr.vmem [resolvable:$true] %s157
          %163 = dma.hbm_to_vmem [thread:$0]  %s156, 1536, %s158, [#allocation3], 128, 128, 8
        $region24: #{tpu_custom_call.1} parent=11 // pred_fallthru
          _
      $region12: #{tpu_custom_call.1} parent=5 // pred_fallthru
        _
      %p164 = scmp.lt.s32.totalorder %s14, 2
      // Predicated region
      $region25: #{tpu_custom_call.1} parent=5 // pred_check
        %p165 = pneg %p164
      $region26: #{tpu_custom_call.1} parent=5 // pred_check_branch
        %167 = sbr.rel (%p165) target = $region28
      $region27: #{tpu_custom_call.1} parent=5 // pred_region
        // Predicated region
        $region29: #{tpu_custom_call.1} parent=27 // pred_check
          %p168 = pneg %p34
        $region30: #{tpu_custom_call.1} parent=27 // pred_check_branch
          %170 = sbr.rel (%p168) target = $region32
        $region31: #{tpu_custom_call.1} parent=27 // pred_region
          %s171 = smul.u32 4, %s14
          %p172 = scmp.lt.s32.totalorder %s171, 7
          %s173 = scalar_select %p172, %s171, 7
          %s174 = smul.addr %s173, 8
          %s175 = scalar_lea.vmem %s0, %s174
          %s176 = smul.u32 4, %s14
        $region32: #{tpu_custom_call.1} parent=27 // pred_fallthru
          _
      $region28: #{tpu_custom_call.1} parent=5 // pred_fallthru
        _
      %p177 = scmp.le.s32.totalorder 1, %s14
      %p178 = scmp.lt.s32.totalorder %s14, 3
      %p179 = pnand %p177, %p178
      %p180 = pneg %p179
      // Predicated region
      $region33: #{tpu_custom_call.1} parent=5 // pred_check
        _
      $region34: #{tpu_custom_call.1} parent=5 // pred_check_branch
        %182 = sbr.rel (%p179) target = $region36
      $region35: #{tpu_custom_call.1} parent=5 // pred_region
        %s183 = ssub.s32 %s14, 1
        // Predicated region
        $region37: #{tpu_custom_call.1} parent=35 // pred_check
          %p184 = pneg %p103
        $region38: #{tpu_custom_call.1} parent=35 // pred_check_branch
          %186 = sbr.rel (%p184) target = $region40
        $region39: #{tpu_custom_call.1} parent=35 // pred_region
          %188 = dma.done [#allocation3], 1536
        $region40: #{tpu_custom_call.1} parent=35 // pred_fallthru
          _
        %s189 = smul.u32 4, %s19
        %p190 = scmp.lt.s32.totalorder %s189, 7
        %s191 = scalar_select %p190, %s189, 7
        %s192 = smul.addr %s191, 8
        %s193 = scalar_lea.vmem %s0, %s192
        %p194 = pneg %p40
        %p195 = pneg %p37
        %p196 = pneg %p61
        %p197 = pneg %p58
        %p198 = pneg %p82
        %p199 = pneg %p79
        %p200 = pneg %p103
        %p201 = pneg %p100
        %p202 = pneg %p129
        %p203 = pneg %p126
        %s204 = sand.u32 %s116, 1
        %s205 = scalar_lea.sflag [#allocation4], %s204
        %s206 = sand.u32 %s116, 1
        %s207 = smul.addr %s206, 32
        %s208 = scalar_lea.vmem [#allocation5], %s207
        %s209 = smul.u32 4, %s19
        %p210 = scmp.lt.s32.totalorder %s209, 7
        %s211 = scalar_select %p210, %s209, 7
        %s212 = smul.addr %s211, 8
        %s213 = scalar_lea.vmem %s0, %s212
        %s214 = smul.u32 4, %s19
        %s215 = smul.u32 4, %s19
        %v216 = vld [vmem:[%s213] sm:$0xff]
        %v217 = vld [vmem:[%s213 + $0x8] sm:$0xff]
        %v218 = vld [vmem:[%s213 + $0x10] sm:$0xff]
        %v219 = vld [vmem:[%s213 + $0x18] sm:$0xff]
        %v220 = vcvt.s32.f32 %v216
        %v221 = vcvt.s32.f32 %v217
        %v222 = vcvt.s32.f32 %v218
        %v223 = vcvt.s32.f32 %v219
        %v224 = vld [vmem:[%s1] sm:$0xff]
        %v225 = vld [vmem:[%s1 + $0x8] sm:$0xf]
        %vm226 = vcmask 97280
        %v228 = vsel %vm226, %v220, 0
        %v231 = vsel %vm226, %v221, 0
        %v234 = vsel %vm226, %v222, 0
        %v237 = vsel %vm226, %v223, 0
        %vm239 = vcmask 1043456
        %v241 = vsel %vm239, %v225, 0
        %243 = vmatpush.msra.mxu0 0.0
        %244 = vmatpush.msra.mxu0 0.0
        %245 = vmatpush.msra.mxu0 0.0
        %246 = vmatpush.msra.mxu0 0.0
        %247 = vmatpush.msra.mxu0 0.0
        %248 = vmatpush.msra.mxu0 0.0
        %249 = vmatpush.msra.mxu0 0.0
        %250 = vmatpush.msra.mxu0 0.0
        %251 = vmatpush.msra.mxu0 0.0
        %252 = vmatpush.msra.mxu0 0.0
        %253 = vmatpush.msra.mxu0 0.0
        %254 = vmatpush.msra.mxu0 0.0
        %255 = vmatpush.msra.mxu0 0.0
        %256 = vmatpush.msra.mxu0 0.0
        %v257 = vand.u32 %v241, 4294901760
        %258 = vmatpush.msra.mxu0 %v257
        %v259 = vand.u32 %v224, 4294901760
        %260 = vmatpush.msra.mxu0 %v259
        %v261 = vand.u32 %v228, 4294901760
        %v262 = vsub.f32 %v228, %v261
        %v263 = vand.u32 %v262, 4294901760
        %v264 = vsub.f32 %v262, %v263
        %v265 = vand.u32 %v264, 4294901760
        %266 = vmatmul.f32.gmra.mxu0 %v265
        %v267 = vpop.f32.mrf.mxu0
        %v268 = vadd.f32 0.0, %v267
        %v269 = vand.u32 %v231, 4294901760
        %v270 = vsub.f32 %v231, %v269
        %v271 = vand.u32 %v270, 4294901760
        %v272 = vsub.f32 %v270, %v271
        %v273 = vand.u32 %v272, 4294901760
        %274 = vmatmul.f32.gmra.mxu0 %v273
        %v275 = vpop.f32.mrf.mxu0
        %v276 = vadd.f32 0.0, %v275
        %v277 = vand.u32 %v234, 4294901760
        %v278 = vsub.f32 %v234, %v277
        %v279 = vand.u32 %v278, 4294901760
        %v280 = vsub.f32 %v278, %v279
        %v281 = vand.u32 %v280, 4294901760
        %282 = vmatmul.f32.gmra.mxu0 %v281
        %v283 = vpop.f32.mrf.mxu0
        %v284 = vadd.f32 0.0, %v283
        %v285 = vand.u32 %v237, 4294901760
        %v286 = vsub.f32 %v237, %v285
        %v287 = vand.u32 %v286, 4294901760
        %v288 = vsub.f32 %v286, %v287
        %v289 = vand.u32 %v288, 4294901760
        %290 = vmatmul.f32.gmra.mxu0 %v289
        %v291 = vpop.f32.mrf.mxu0
        %v292 = vadd.f32 0.0, %v291
        %293 = vdwg.mxu0
        %294 = vmatpush.msra.mxu0 0.0
        %295 = vmatpush.msra.mxu0 0.0
        %296 = vmatpush.msra.mxu0 0.0
        %297 = vmatpush.msra.mxu0 0.0
        %298 = vmatpush.msra.mxu0 0.0
        %299 = vmatpush.msra.mxu0 0.0
        %300 = vmatpush.msra.mxu0 0.0
        %301 = vmatpush.msra.mxu0 0.0
        %302 = vmatpush.msra.mxu0 0.0
        %303 = vmatpush.msra.mxu0 0.0
        %304 = vmatpush.msra.mxu0 0.0
        %305 = vmatpush.msra.mxu0 0.0
        %306 = vmatpush.msra.mxu0 0.0
        %307 = vmatpush.msra.mxu0 0.0
        %v308 = vand.u32 %v241, 4294901760
        %v309 = vsub.f32 %v241, %v308
        %v310 = vand.u32 %v309, 4294901760
        %v311 = vsub.f32 %v309, %v310
        %v312 = vand.u32 %v311, 4294901760
        %313 = vmatpush.msra.mxu0 %v312
        %v314 = vand.u32 %v224, 4294901760
        %v315 = vsub.f32 %v224, %v314
        %v316 = vand.u32 %v315, 4294901760
        %v317 = vsub.f32 %v315, %v316
        %v318 = vand.u32 %v317, 4294901760
        %319 = vmatpush.msra.mxu0 %v318
        %v320 = vand.u32 %v228, 4294901760
        %321 = vmatmul.f32.gmra.mxu0 %v320
        %v322 = vpop.f32.mrf.mxu0
        %v323 = vadd.f32 %v268, %v322
        %v324 = vand.u32 %v231, 4294901760
        %325 = vmatmul.f32.gmra.mxu0 %v324
        %v326 = vpop.f32.mrf.mxu0
        %v327 = vadd.f32 %v276, %v326
        %v328 = vand.u32 %v234, 4294901760
        %329 = vmatmul.f32.gmra.mxu0 %v328
        %v330 = vpop.f32.mrf.mxu0
        %v331 = vadd.f32 %v284, %v330
        %v332 = vand.u32 %v237, 4294901760
        %333 = vmatmul.f32.gmra.mxu0 %v332
        %v334 = vpop.f32.mrf.mxu0
        %v335 = vadd.f32 %v292, %v334
        %336 = vdwg.mxu0
        %337 = vmatpush.msra.mxu0 0.0
        %338 = vmatpush.msra.mxu0 0.0
        %339 = vmatpush.msra.mxu0 0.0
        %340 = vmatpush.msra.mxu0 0.0
        %341 = vmatpush.msra.mxu0 0.0
        %342 = vmatpush.msra.mxu0 0.0
        %343 = vmatpush.msra.mxu0 0.0
        %344 = vmatpush.msra.mxu0 0.0
        %345 = vmatpush.msra.mxu0 0.0
        %346 = vmatpush.msra.mxu0 0.0
        %347 = vmatpush.msra.mxu0 0.0
        %348 = vmatpush.msra.mxu0 0.0
        %349 = vmatpush.msra.mxu0 0.0
        %350 = vmatpush.msra.mxu0 0.0
        %v351 = vand.u32 %v241, 4294901760
        %v352 = vsub.f32 %v241, %v351
        %353 = vmatpush.msra.mxu0 %v352
        %v354 = vand.u32 %v224, 4294901760
        %v355 = vsub.f32 %v224, %v354
        %356 = vmatpush.msra.mxu0 %v355
        %v357 = vand.u32 %v228, 4294901760
        %v358 = vsub.f32 %v228, %v357
        %359 = vmatmul.f32.gmra.mxu0 %v358
        %v360 = vpop.f32.mrf.mxu0
        %v361 = vadd.f32 %v323, %v360
        %v362 = vand.u32 %v231, 4294901760
        %v363 = vsub.f32 %v231, %v362
        %364 = vmatmul.f32.gmra.mxu0 %v363
        %v365 = vpop.f32.mrf.mxu0
        %v366 = vadd.f32 %v327, %v365
        %v367 = vand.u32 %v234, 4294901760
        %v368 = vsub.f32 %v234, %v367
        %369 = vmatmul.f32.gmra.mxu0 %v368
        %v370 = vpop.f32.mrf.mxu0
        %v371 = vadd.f32 %v331, %v370
        %v372 = vand.u32 %v237, 4294901760
        %v373 = vsub.f32 %v237, %v372
        %374 = vmatmul.f32.gmra.mxu0 %v373
        %v375 = vpop.f32.mrf.mxu0
        %v376 = vadd.f32 %v335, %v375
        %377 = vdwg.mxu0
        %378 = vmatpush.msra.mxu0 0.0
        %379 = vmatpush.msra.mxu0 0.0
        %380 = vmatpush.msra.mxu0 0.0
        %381 = vmatpush.msra.mxu0 0.0
        %382 = vmatpush.msra.mxu0 0.0
        %383 = vmatpush.msra.mxu0 0.0
        %384 = vmatpush.msra.mxu0 0.0
        %385 = vmatpush.msra.mxu0 0.0
        %386 = vmatpush.msra.mxu0 0.0
        %387 = vmatpush.msra.mxu0 0.0
        %388 = vmatpush.msra.mxu0 0.0
        %389 = vmatpush.msra.mxu0 0.0
        %390 = vmatpush.msra.mxu0 0.0
        %391 = vmatpush.msra.mxu0 0.0
        %v392 = vand.u32 %v241, 4294901760
        %393 = vmatpush.msra.mxu0 %v392
        %v394 = vand.u32 %v224, 4294901760
        %395 = vmatpush.msra.mxu0 %v394
        %v396 = vand.u32 %v228, 4294901760
        %v397 = vsub.f32 %v228, %v396
        %v398 = vand.u32 %v397, 4294901760
        %399 = vmatmul.f32.gmra.mxu0 %v398
        %v400 = vpop.f32.mrf.mxu0
        %v401 = vadd.f32 %v361, %v400
        %v402 = vand.u32 %v231, 4294901760
        %v403 = vsub.f32 %v231, %v402
        %v404 = vand.u32 %v403, 4294901760
        %405 = vmatmul.f32.gmra.mxu0 %v404
        %v406 = vpop.f32.mrf.mxu0
        %v407 = vadd.f32 %v366, %v406
        %v408 = vand.u32 %v234, 4294901760
        %v409 = vsub.f32 %v234, %v408
        %v410 = vand.u32 %v409, 4294901760
        %411 = vmatmul.f32.gmra.mxu0 %v410
        %v412 = vpop.f32.mrf.mxu0
        %v413 = vadd.f32 %v371, %v412
        %v414 = vand.u32 %v237, 4294901760
        %v415 = vsub.f32 %v237, %v414
        %v416 = vand.u32 %v415, 4294901760
        %417 = vmatmul.f32.gmra.mxu0 %v416
        %v418 = vpop.f32.mrf.mxu0
        %v419 = vadd.f32 %v376, %v418
        %420 = vdwg.mxu0
        %421 = vmatpush.msra.mxu0 0.0
        %422 = vmatpush.msra.mxu0 0.0
        %423 = vmatpush.msra.mxu0 0.0
        %424 = vmatpush.msra.mxu0 0.0
        %425 = vmatpush.msra.mxu0 0.0
        %426 = vmatpush.msra.mxu0 0.0
        %427 = vmatpush.msra.mxu0 0.0
        %428 = vmatpush.msra.mxu0 0.0
        %429 = vmatpush.msra.mxu0 0.0
        %430 = vmatpush.msra.mxu0 0.0
        %431 = vmatpush.msra.mxu0 0.0
        %432 = vmatpush.msra.mxu0 0.0
        %433 = vmatpush.msra.mxu0 0.0
        %434 = vmatpush.msra.mxu0 0.0
        %v435 = vand.u32 %v241, 4294901760
        %v436 = vsub.f32 %v241, %v435
        %v437 = vand.u32 %v436, 4294901760
        %438 = vmatpush.msra.mxu0 %v437
        %v439 = vand.u32 %v224, 4294901760
        %v440 = vsub.f32 %v224, %v439
        %v441 = vand.u32 %v440, 4294901760
        %442 = vmatpush.msra.mxu0 %v441
        %v443 = vand.u32 %v228, 4294901760
        %444 = vmatmul.f32.gmra.mxu0 %v443
        %v445 = vpop.f32.mrf.mxu0
        %v446 = vadd.f32 %v401, %v445
        %v447 = vand.u32 %v231, 4294901760
        %448 = vmatmul.f32.gmra.mxu0 %v447
        %v449 = vpop.f32.mrf.mxu0
        %v450 = vadd.f32 %v407, %v449
        %v451 = vand.u32 %v234, 4294901760
        %452 = vmatmul.f32.gmra.mxu0 %v451
        %v453 = vpop.f32.mrf.mxu0
        %v454 = vadd.f32 %v413, %v453
        %v455 = vand.u32 %v237, 4294901760
        %456 = vmatmul.f32.gmra.mxu0 %v455
        %v457 = vpop.f32.mrf.mxu0
        %v458 = vadd.f32 %v419, %v457
        %459 = vdwg.mxu0
        %460 = vmatpush.msra.mxu0 0.0
        %461 = vmatpush.msra.mxu0 0.0
        %462 = vmatpush.msra.mxu0 0.0
        %463 = vmatpush.msra.mxu0 0.0
        %464 = vmatpush.msra.mxu0 0.0
        %465 = vmatpush.msra.mxu0 0.0
        %466 = vmatpush.msra.mxu0 0.0
        %467 = vmatpush.msra.mxu0 0.0
        %468 = vmatpush.msra.mxu0 0.0
        %469 = vmatpush.msra.mxu0 0.0
        %470 = vmatpush.msra.mxu0 0.0
        %471 = vmatpush.msra.mxu0 0.0
        %472 = vmatpush.msra.mxu0 0.0
        %473 = vmatpush.msra.mxu0 0.0
        %v474 = vand.u32 %v241, 4294901760
        %475 = vmatpush.msra.mxu0 %v474
        %v476 = vand.u32 %v224, 4294901760
        %477 = vmatpush.msra.mxu0 %v476
        %v478 = vand.u32 %v228, 4294901760
        %479 = vmatmul.f32.gmra.mxu0 %v478
        %v480 = vpop.f32.mrf.mxu0
        %v481 = vadd.f32 %v446, %v480
        %v482 = vand.u32 %v231, 4294901760
        %483 = vmatmul.f32.gmra.mxu0 %v482
        %v484 = vpop.f32.mrf.mxu0
        %v485 = vadd.f32 %v450, %v484
        %v486 = vand.u32 %v234, 4294901760
        %487 = vmatmul.f32.gmra.mxu0 %v486
        %v488 = vpop.f32.mrf.mxu0
        %v489 = vadd.f32 %v454, %v488
        %v490 = vand.u32 %v237, 4294901760
        %491 = vmatmul.f32.gmra.mxu0 %v490
        %v492 = vpop.f32.mrf.mxu0
        %v493 = vadd.f32 %v458, %v492
        %494 = vdwg.mxu0
        %v495 = vld [vmem:[%s2] sm:$0x1]
        %v497 = vperm.slane %v495, 0
        %vm499 = vcmp.eq.f32.partialorder %v481, %v497
        %vm500 = vcmp.eq.f32.partialorder %v485, %v497
        %vm501 = vcmp.eq.f32.partialorder %v489, %v497
        %vm502 = vcmp.eq.f32.partialorder %v493, %v497
        %v503 = vsel %vm499, 1, 0
        %v504 = vsel %vm500, 1, 0
        %v505 = vsel %vm501, 1, 0
        %v506 = vsel %vm502, 1, 0
        %v507 = vcvt.s32.f32 %v503
        %v508 = vcvt.s32.f32 %v504
        %v509 = vcvt.s32.f32 %v505
        %v510 = vcvt.s32.f32 %v506
        %v511 = vld [vmem:[#allocation2] sm:$0xff]
        %v512 = vld [vmem:[#allocation2 + $0x8] sm:$0xff]
        %v513 = vld [vmem:[#allocation2 + $0x10] sm:$0xff]
        %v514 = vld [vmem:[#allocation2 + $0x18] sm:$0xff]
        %v515 = vld [vmem:[#allocation2 + $0x20] sm:$0xff]
        %v516 = vld [vmem:[#allocation2 + $0x28] sm:$0xff]
        %v517 = vld [vmem:[#allocation2 + $0x30] sm:$0xff]
        %v518 = vld [vmem:[#allocation2 + $0x38] sm:$0xff]
        %v519 = vld [vmem:[#allocation2 + $0x40] sm:$0xff]
        %v520 = vld [vmem:[#allocation2 + $0x48] sm:$0xff]
        %v521 = vld [vmem:[#allocation2 + $0x50] sm:$0xff]
        %v522 = vld [vmem:[#allocation2 + $0x58] sm:$0xff]
        %vm523 = vcmask 785408
        %v525 = vsel %vm523, %v507, 0
        %v528 = vsel %vm523, %v508, 0
        %v531 = vsel %vm523, %v509, 0
        %v534 = vsel %vm523, %v510, 0
        %536 = vmatpush.msra.mxu0 0.0
        %537 = vmatpush.msra.mxu0 0.0
        %538 = vmatpush.msra.mxu0 0.0
        %539 = vmatpush.msra.mxu0 0.0
        %v540 = vand.u32 %v522, 4294901760
        %541 = vmatpush.msra.mxu0 %v540
        %v542 = vand.u32 %v521, 4294901760
        %543 = vmatpush.msra.mxu0 %v542
        %v544 = vand.u32 %v520, 4294901760
        %545 = vmatpush.msra.mxu0 %v544
        %v546 = vand.u32 %v519, 4294901760
        %547 = vmatpush.msra.mxu0 %v546
        %v548 = vand.u32 %v518, 4294901760
        %549 = vmatpush.msra.mxu0 %v548
        %v550 = vand.u32 %v517, 4294901760
        %551 = vmatpush.msra.mxu0 %v550
        %v552 = vand.u32 %v516, 4294901760
        %553 = vmatpush.msra.mxu0 %v552
        %v554 = vand.u32 %v515, 4294901760
        %555 = vmatpush.msra.mxu0 %v554
        %v556 = vand.u32 %v514, 4294901760
        %557 = vmatpush.msra.mxu0 %v556
        %v558 = vand.u32 %v513, 4294901760
        %559 = vmatpush.msra.mxu0 %v558
        %v560 = vand.u32 %v512, 4294901760
        %561 = vmatpush.msra.mxu0 %v560
        %v562 = vand.u32 %v511, 4294901760
        %563 = vmatpush.msra.mxu0 %v562
        %v564 = vand.u32 %v525, 4294901760
        %v565 = vsub.f32 %v525, %v564
        %v566 = vand.u32 %v565, 4294901760
        %v567 = vsub.f32 %v565, %v566
        %v568 = vand.u32 %v567, 4294901760
        %569 = vmatmul.f32.gmra.mxu0 %v568
        %v570 = vpop.f32.mrf.mxu0
        %v571 = vadd.f32 0.0, %v570
        %v572 = vand.u32 %v528, 4294901760
        %v573 = vsub.f32 %v528, %v572
        %v574 = vand.u32 %v573, 4294901760
        %v575 = vsub.f32 %v573, %v574
        %v576 = vand.u32 %v575, 4294901760
        %577 = vmatmul.f32.gmra.mxu0 %v576
        %v578 = vpop.f32.mrf.mxu0
        %v579 = vadd.f32 0.0, %v578
        %v580 = vand.u32 %v531, 4294901760
        %v581 = vsub.f32 %v531, %v580
        %v582 = vand.u32 %v581, 4294901760
        %v583 = vsub.f32 %v581, %v582
        %v584 = vand.u32 %v583, 4294901760
        %585 = vmatmul.f32.gmra.mxu0 %v584
        %v586 = vpop.f32.mrf.mxu0
        %v587 = vadd.f32 0.0, %v586
        %v588 = vand.u32 %v534, 4294901760
        %v589 = vsub.f32 %v534, %v588
        %v590 = vand.u32 %v589, 4294901760
        %v591 = vsub.f32 %v589, %v590
        %v592 = vand.u32 %v591, 4294901760
        %593 = vmatmul.f32.gmra.mxu0 %v592
        %v594 = vpop.f32.mrf.mxu0
        %v595 = vadd.f32 0.0, %v594
        %596 = vdwg.mxu0
        %597 = vmatpush.msra.mxu0 0.0
        %598 = vmatpush.msra.mxu0 0.0
        %599 = vmatpush.msra.mxu0 0.0
        %600 = vmatpush.msra.mxu0 0.0
        %v601 = vand.u32 %v522, 4294901760
        %v602 = vsub.f32 %v522, %v601
        %v603 = vand.u32 %v602, 4294901760
        %v604 = vsub.f32 %v602, %v603
        %v605 = vand.u32 %v604, 4294901760
        %606 = vmatpush.msra.mxu0 %v605
        %v607 = vand.u32 %v521, 4294901760
        %v608 = vsub.f32 %v521, %v607
        %v609 = vand.u32 %v608, 4294901760
        %v610 = vsub.f32 %v608, %v609
        %v611 = vand.u32 %v610, 4294901760
        %612 = vmatpush.msra.mxu0 %v611
        %v613 = vand.u32 %v520, 4294901760
        %v614 = vsub.f32 %v520, %v613
        %v615 = vand.u32 %v614, 4294901760
        %v616 = vsub.f32 %v614, %v615
        %v617 = vand.u32 %v616, 4294901760
        %618 = vmatpush.msra.mxu0 %v617
        %v619 = vand.u32 %v519, 4294901760
        %v620 = vsub.f32 %v519, %v619
        %v621 = vand.u32 %v620, 4294901760
        %v622 = vsub.f32 %v620, %v621
        %v623 = vand.u32 %v622, 4294901760
        %624 = vmatpush.msra.mxu0 %v623
        %v625 = vand.u32 %v518, 4294901760
        %v626 = vsub.f32 %v518, %v625
        %v627 = vand.u32 %v626, 4294901760
        %v628 = vsub.f32 %v626, %v627
        %v629 = vand.u32 %v628, 4294901760
        %630 = vmatpush.msra.mxu0 %v629
        %v631 = vand.u32 %v517, 4294901760
        %v632 = vsub.f32 %v517, %v631
        %v633 = vand.u32 %v632, 4294901760
        %v634 = vsub.f32 %v632, %v633
        %v635 = vand.u32 %v634, 4294901760
        %636 = vmatpush.msra.mxu0 %v635
        %v637 = vand.u32 %v516, 4294901760
        %v638 = vsub.f32 %v516, %v637
        %v639 = vand.u32 %v638, 4294901760
        %v640 = vsub.f32 %v638, %v639
        %v641 = vand.u32 %v640, 4294901760
        %642 = vmatpush.msra.mxu0 %v641
        %v643 = vand.u32 %v515, 4294901760
        %v644 = vsub.f32 %v515, %v643
        %v645 = vand.u32 %v644, 4294901760
        %v646 = vsub.f32 %v644, %v645
        %v647 = vand.u32 %v646, 4294901760
        %648 = vmatpush.msra.mxu0 %v647
        %v649 = vand.u32 %v514, 4294901760
        %v650 = vsub.f32 %v514, %v649
        %v651 = vand.u32 %v650, 4294901760
        %v652 = vsub.f32 %v650, %v651
        %v653 = vand.u32 %v652, 4294901760
        %654 = vmatpush.msra.mxu0 %v653
        %v655 = vand.u32 %v513, 4294901760
        %v656 = vsub.f32 %v513, %v655
        %v657 = vand.u32 %v656, 4294901760
        %v658 = vsub.f32 %v656, %v657
        %v659 = vand.u32 %v658, 4294901760
        %660 = vmatpush.msra.mxu0 %v659
        %v661 = vand.u32 %v512, 4294901760
        %v662 = vsub.f32 %v512, %v661
        %v663 = vand.u32 %v662, 4294901760
        %v664 = vsub.f32 %v662, %v663
        %v665 = vand.u32 %v664, 4294901760
        %666 = vmatpush.msra.mxu0 %v665
        %v667 = vand.u32 %v511, 4294901760
        %v668 = vsub.f32 %v511, %v667
        %v669 = vand.u32 %v668, 4294901760
        %v670 = vsub.f32 %v668, %v669
        %v671 = vand.u32 %v670, 4294901760
        %672 = vmatpush.msra.mxu0 %v671
        %v673 = vand.u32 %v525, 4294901760
        %674 = vmatmul.f32.gmra.mxu0 %v673
        %v675 = vpop.f32.mrf.mxu0
        %v676 = vadd.f32 %v571, %v675
        %v677 = vand.u32 %v528, 4294901760
        %678 = vmatmul.f32.gmra.mxu0 %v677
        %v679 = vpop.f32.mrf.mxu0
        %v680 = vadd.f32 %v579, %v679
        %v681 = vand.u32 %v531, 4294901760
        %682 = vmatmul.f32.gmra.mxu0 %v681
        %v683 = vpop.f32.mrf.mxu0
        %v684 = vadd.f32 %v587, %v683
        %v685 = vand.u32 %v534, 4294901760
        %686 = vmatmul.f32.gmra.mxu0 %v685
        %v687 = vpop.f32.mrf.mxu0
        %v688 = vadd.f32 %v595, %v687
        %689 = vdwg.mxu0
        %690 = vmatpush.msra.mxu0 0.0
        %691 = vmatpush.msra.mxu0 0.0
        %692 = vmatpush.msra.mxu0 0.0
        %693 = vmatpush.msra.mxu0 0.0
        %v694 = vand.u32 %v522, 4294901760
        %v695 = vsub.f32 %v522, %v694
        %696 = vmatpush.msra.mxu0 %v695
        %v697 = vand.u32 %v521, 4294901760
        %v698 = vsub.f32 %v521, %v697
        %699 = vmatpush.msra.mxu0 %v698
        %v700 = vand.u32 %v520, 4294901760
        %v701 = vsub.f32 %v520, %v700
        %702 = vmatpush.msra.mxu0 %v701
        %v703 = vand.u32 %v519, 4294901760
        %v704 = vsub.f32 %v519, %v703
        %705 = vmatpush.msra.mxu0 %v704
        %v706 = vand.u32 %v518, 4294901760
        %v707 = vsub.f32 %v518, %v706
        %708 = vmatpush.msra.mxu0 %v707
        %v709 = vand.u32 %v517, 4294901760
        %v710 = vsub.f32 %v517, %v709
        %711 = vmatpush.msra.mxu0 %v710
        %v712 = vand.u32 %v516, 4294901760
        %v713 = vsub.f32 %v516, %v712
        %714 = vmatpush.msra.mxu0 %v713
        %v715 = vand.u32 %v515, 4294901760
        %v716 = vsub.f32 %v515, %v715
        %717 = vmatpush.msra.mxu0 %v716
        %v718 = vand.u32 %v514, 4294901760
        %v719 = vsub.f32 %v514, %v718
        %720 = vmatpush.msra.mxu0 %v719
        %v721 = vand.u32 %v513, 4294901760
        %v722 = vsub.f32 %v513, %v721
        %723 = vmatpush.msra.mxu0 %v722
        %v724 = vand.u32 %v512, 4294901760
        %v725 = vsub.f32 %v512, %v724
        %726 = vmatpush.msra.mxu0 %v725
        %v727 = vand.u32 %v511, 4294901760
        %v728 = vsub.f32 %v511, %v727
        %729 = vmatpush.msra.mxu0 %v728
        %v730 = vand.u32 %v525, 4294901760
        %v731 = vsub.f32 %v525, %v730
        %732 = vmatmul.f32.gmra.mxu0 %v731
        %v733 = vpop.f32.mrf.mxu0
        %v734 = vadd.f32 %v676, %v733
        %v735 = vand.u32 %v528, 4294901760
        %v736 = vsub.f32 %v528, %v735
        %737 = vmatmul.f32.gmra.mxu0 %v736
        %v738 = vpop.f32.mrf.mxu0
        %v739 = vadd.f32 %v680, %v738
        %v740 = vand.u32 %v531, 4294901760
        %v741 = vsub.f32 %v531, %v740
        %742 = vmatmul.f32.gmra.mxu0 %v741
        %v743 = vpop.f32.mrf.mxu0
        %v744 = vadd.f32 %v684, %v743
        %v745 = vand.u32 %v534, 4294901760
        %v746 = vsub.f32 %v534, %v745
        %747 = vmatmul.f32.gmra.mxu0 %v746
        %v748 = vpop.f32.mrf.mxu0
        %v749 = vadd.f32 %v688, %v748
        %750 = vdwg.mxu0
        %751 = vmatpush.msra.mxu0 0.0
        %752 = vmatpush.msra.mxu0 0.0
        %753 = vmatpush.msra.mxu0 0.0
        %754 = vmatpush.msra.mxu0 0.0
        %v755 = vand.u32 %v522, 4294901760
        %756 = vmatpush.msra.mxu0 %v755
        %v757 = vand.u32 %v521, 4294901760
        %758 = vmatpush.msra.mxu0 %v757
        %v759 = vand.u32 %v520, 4294901760
        %760 = vmatpush.msra.mxu0 %v759
        %v761 = vand.u32 %v519, 4294901760
        %762 = vmatpush.msra.mxu0 %v761
        %v763 = vand.u32 %v518, 4294901760
        %764 = vmatpush.msra.mxu0 %v763
        %v765 = vand.u32 %v517, 4294901760
        %766 = vmatpush.msra.mxu0 %v765
        %v767 = vand.u32 %v516, 4294901760
        %768 = vmatpush.msra.mxu0 %v767
        %v769 = vand.u32 %v515, 4294901760
        %770 = vmatpush.msra.mxu0 %v769
        %v771 = vand.u32 %v514, 4294901760
        %772 = vmatpush.msra.mxu0 %v771
        %v773 = vand.u32 %v513, 4294901760
        %774 = vmatpush.msra.mxu0 %v773
        %v775 = vand.u32 %v512, 4294901760
        %776 = vmatpush.msra.mxu0 %v775
        %v777 = vand.u32 %v511, 4294901760
        %778 = vmatpush.msra.mxu0 %v777
        %v779 = vand.u32 %v525, 4294901760
        %v780 = vsub.f32 %v525, %v779
        %v781 = vand.u32 %v780, 4294901760
        %782 = vmatmul.f32.gmra.mxu0 %v781
        %v783 = vpop.f32.mrf.mxu0
        %v784 = vadd.f32 %v734, %v783
        %v785 = vand.u32 %v528, 4294901760
        %v786 = vsub.f32 %v528, %v785
        %v787 = vand.u32 %v786, 4294901760
        %788 = vmatmul.f32.gmra.mxu0 %v787
        %v789 = vpop.f32.mrf.mxu0
        %v790 = vadd.f32 %v739, %v789
        %v791 = vand.u32 %v531, 4294901760
        %v792 = vsub.f32 %v531, %v791
        %v793 = vand.u32 %v792, 4294901760
        %794 = vmatmul.f32.gmra.mxu0 %v793
        %v795 = vpop.f32.mrf.mxu0
        %v796 = vadd.f32 %v744, %v795
        %v797 = vand.u32 %v534, 4294901760
        %v798 = vsub.f32 %v534, %v797
        %v799 = vand.u32 %v798, 4294901760
        %800 = vmatmul.f32.gmra.mxu0 %v799
        %v801 = vpop.f32.mrf.mxu0
        %v802 = vadd.f32 %v749, %v801
        %803 = vdwg.mxu0
        %804 = vmatpush.msra.mxu0 0.0
        %805 = vmatpush.msra.mxu0 0.0
        %806 = vmatpush.msra.mxu0 0.0
        %807 = vmatpush.msra.mxu0 0.0
        %v808 = vand.u32 %v522, 4294901760
        %v809 = vsub.f32 %v522, %v808
        %v810 = vand.u32 %v809, 4294901760
        %811 = vmatpush.msra.mxu0 %v810
        %v812 = vand.u32 %v521, 4294901760
        %v813 = vsub.f32 %v521, %v812
        %v814 = vand.u32 %v813, 4294901760
        %815 = vmatpush.msra.mxu0 %v814
        %v816 = vand.u32 %v520, 4294901760
        %v817 = vsub.f32 %v520, %v816
        %v818 = vand.u32 %v817, 4294901760
        %819 = vmatpush.msra.mxu0 %v818
        %v820 = vand.u32 %v519, 4294901760
        %v821 = vsub.f32 %v519, %v820
        %v822 = vand.u32 %v821, 4294901760
        %823 = vmatpush.msra.mxu0 %v822
        %v824 = vand.u32 %v518, 4294901760
        %v825 = vsub.f32 %v518, %v824
        %v826 = vand.u32 %v825, 4294901760
        %827 = vmatpush.msra.mxu0 %v826
        %v828 = vand.u32 %v517, 4294901760
        %v829 = vsub.f32 %v517, %v828
        %v830 = vand.u32 %v829, 4294901760
        %831 = vmatpush.msra.mxu0 %v830
        %v832 = vand.u32 %v516, 4294901760
        %v833 = vsub.f32 %v516, %v832
        %v834 = vand.u32 %v833, 4294901760
        %835 = vmatpush.msra.mxu0 %v834
        %v836 = vand.u32 %v515, 4294901760
        %v837 = vsub.f32 %v515, %v836
        %v838 = vand.u32 %v837, 4294901760
        %839 = vmatpush.msra.mxu0 %v838
        %v840 = vand.u32 %v514, 4294901760
        %v841 = vsub.f32 %v514, %v840
        %v842 = vand.u32 %v841, 4294901760
        %843 = vmatpush.msra.mxu0 %v842
        %v844 = vand.u32 %v513, 4294901760
        %v845 = vsub.f32 %v513, %v844
        %v846 = vand.u32 %v845, 4294901760
        %847 = vmatpush.msra.mxu0 %v846
        %v848 = vand.u32 %v512, 4294901760
        %v849 = vsub.f32 %v512, %v848
        %v850 = vand.u32 %v849, 4294901760
        %851 = vmatpush.msra.mxu0 %v850
        %v852 = vand.u32 %v511, 4294901760
        %v853 = vsub.f32 %v511, %v852
        %v854 = vand.u32 %v853, 4294901760
        %855 = vmatpush.msra.mxu0 %v854
        %v856 = vand.u32 %v525, 4294901760
        %857 = vmatmul.f32.gmra.mxu0 %v856
        %v858 = vpop.f32.mrf.mxu0
        %v859 = vadd.f32 %v784, %v858
        %v860 = vand.u32 %v528, 4294901760
        %861 = vmatmul.f32.gmra.mxu0 %v860
        %v862 = vpop.f32.mrf.mxu0
        %v863 = vadd.f32 %v790, %v862
        %v864 = vand.u32 %v531, 4294901760
        %865 = vmatmul.f32.gmra.mxu0 %v864
        %v866 = vpop.f32.mrf.mxu0
        %v867 = vadd.f32 %v796, %v866
        %v868 = vand.u32 %v534, 4294901760
        %869 = vmatmul.f32.gmra.mxu0 %v868
        %v870 = vpop.f32.mrf.mxu0
        %v871 = vadd.f32 %v802, %v870
        %872 = vdwg.mxu0
        %873 = vmatpush.msra.mxu0 0.0
        %874 = vmatpush.msra.mxu0 0.0
        %875 = vmatpush.msra.mxu0 0.0
        %876 = vmatpush.msra.mxu0 0.0
        %v877 = vand.u32 %v522, 4294901760
        %878 = vmatpush.msra.mxu0 %v877
        %v879 = vand.u32 %v521, 4294901760
        %880 = vmatpush.msra.mxu0 %v879
        %v881 = vand.u32 %v520, 4294901760
        %882 = vmatpush.msra.mxu0 %v881
        %v883 = vand.u32 %v519, 4294901760
        %884 = vmatpush.msra.mxu0 %v883
        %v885 = vand.u32 %v518, 4294901760
        %886 = vmatpush.msra.mxu0 %v885
        %v887 = vand.u32 %v517, 4294901760
        %888 = vmatpush.msra.mxu0 %v887
        %v889 = vand.u32 %v516, 4294901760
        %890 = vmatpush.msra.mxu0 %v889
        %v891 = vand.u32 %v515, 4294901760
        %892 = vmatpush.msra.mxu0 %v891
        %v893 = vand.u32 %v514, 4294901760
        %894 = vmatpush.msra.mxu0 %v893
        %v895 = vand.u32 %v513, 4294901760
        %896 = vmatpush.msra.mxu0 %v895
        %v897 = vand.u32 %v512, 4294901760
        %898 = vmatpush.msra.mxu0 %v897
        %v899 = vand.u32 %v511, 4294901760
        %900 = vmatpush.msra.mxu0 %v899
        %v901 = vand.u32 %v525, 4294901760
        %902 = vmatmul.f32.gmra.mxu0 %v901
        %v903 = vpop.f32.mrf.mxu0
        %v904 = vadd.f32 %v859, %v903
        %v905 = vand.u32 %v528, 4294901760
        %906 = vmatmul.f32.gmra.mxu0 %v905
        %v907 = vpop.f32.mrf.mxu0
        %v908 = vadd.f32 %v863, %v907
        %v909 = vand.u32 %v531, 4294901760
        %910 = vmatmul.f32.gmra.mxu0 %v909
        %v911 = vpop.f32.mrf.mxu0
        %v912 = vadd.f32 %v867, %v911
        %v913 = vand.u32 %v534, 4294901760
        %914 = vmatmul.f32.gmra.mxu0 %v913
        %v915 = vpop.f32.mrf.mxu0
        %v916 = vadd.f32 %v871, %v915
        %917 = vdwg.mxu0
        %918 = vst [vmem:[%s208] sm:$0xff] %v904
        %919 = vst [vmem:[%s208 + $0x8] sm:$0xff] %v908
        %920 = vst [vmem:[%s208 + $0x10] sm:$0xff] %v912
        %921 = vst [vmem:[%s208 + $0x18] sm:$0xff] %v916
        %s922 = sand.u32 %s116, 1
        %s923 = scalar_lea.sflag [#allocation4], %s922
        %s924 = sand.u32 %s116, 1
        %s925 = smul.addr %s924, 32
        %s926 = scalar_lea.vmem [#allocation5], %s925
        // Predicated region
        $region41: #{tpu_custom_call.1} parent=35 // pred_check
          %p927 = pneg %p126
        $region42: #{tpu_custom_call.1} parent=35 // pred_check_branch
          %929 = sbr.rel (%p927) target = $region44
        $region43: #{tpu_custom_call.1} parent=35 // pred_region
          %s930 = smul.u32 4, %s19
          %932 = vsyncadd %s923, 0
          %s933 = smul.addr %s930, 8
          %s934 = scalar_lea.hbm %s4, %s933
          %s935 = sshll.u32 %s926, 4
          %s936 = int_to_ptr.vmem [resolvable:$true] %s935
          %s937 = sshll.u32 %s934, 4
          %s938 = int_to_ptr.hbm [resolvable:$true] %s937
          %943 = dma.vmem_to_hbm [thread:$0]  %s936, 512, %s938, %s923, 128, 128, 8
        $region44: #{tpu_custom_call.1} parent=35 // pred_fallthru
          _
      $region36: #{tpu_custom_call.1} parent=5 // pred_fallthru
        _
      %p944 = scmp.le.s32.totalorder 2, %s14
      // Predicated region
      $region45: #{tpu_custom_call.1} parent=5 // pred_check
        %p945 = pneg %p944
      $region46: #{tpu_custom_call.1} parent=5 // pred_check_branch
        %947 = sbr.rel (%p945) target = $region48
      $region47: #{tpu_custom_call.1} parent=5 // pred_region
        %s948 = ssub.s32 %s14, 2
        // Predicated region
        $region49: #{tpu_custom_call.1} parent=47 // pred_check
          %p949 = pneg %p132
        $region50: #{tpu_custom_call.1} parent=47 // pred_check_branch
          %951 = sbr.rel (%p949) target = $region52
        $region51: #{tpu_custom_call.1} parent=47 // pred_region
          %s952 = sand.u32 %s117, 1
          %s953 = scalar_lea.sflag [#allocation4], %s952
          %s954 = sand.u32 %s117, 1
          %s955 = smul.addr %s954, 32
          %s956 = scalar_lea.vmem [#allocation5], %s955
          %958 = dma.done %s953, 512
        $region52: #{tpu_custom_call.1} parent=47 // pred_fallthru
          _
      $region48: #{tpu_custom_call.1} parent=5 // pred_fallthru
        _
    $region6: #{tpu_custom_call.1} parent=1 // loop_footer
      %s18 = sadd.s32 1, %s14
    $region7: #{tpu_custom_call.1} parent=1 // loop_footer_branch
      %13 = sbr.rel target = $region3
    $region8: #{tpu_custom_call.1} parent=1 // loop_exit
      _
    %959 = vsyncpa [#allocation3], 1
    %s960 = scalar_lea.sflag [#allocation3], 1
    %961 = vsyncpa %s960, 1
    %962 = vsyncpa [#allocation4], 1
    %s963 = scalar_lea.sflag [#allocation4], 1
    %964 = vsyncpa %s963, 1

</llo_original>
